<compile_context>
chip_gen: v6e
topology: v6e:2x2x1
jax: 0.10.0
libtpu: 0.0.40
codegen_flags: <defaults>
</compile_context>

<pallas_src>
import functools

import jax
import jax.numpy as jnp
from jax.experimental import pallas as pl
from jax.experimental.pallas import tpu as pltpu


# (1, 3, TILE) f32 block pads the 3-wide sublane axis to 8 -> 32 B per point
# -> 1 MiB per input block at TILE = 32768. Two inputs x 2 pipeline buffers
# ~= 4 MiB VMEM: fits the default scoped limits on v5e (16 MiB) and v6e/v7x
# (32 MiB) while large enough (>= 512 KiB / block) to approach HBM roofline.
_MAX_TILE_N = 32768


def _l2_warp_kernel(diff_ref, mask_ref, sumloss_ref, nvalid_ref, *,
                    n_points, tile_n):
    k = pl.program_id(1)

    # Resident per-batch accumulators: zero on the first lane-tile.
    @pl.when(k == 0)
    def _():
        sumloss_ref[...] = jnp.zeros_like(sumloss_ref)
        nvalid_ref[...] = jnp.zeros_like(nvalid_ref)

    d = diff_ref[...].astype(jnp.float32)          # (1, 3, TILE_N)
    d0 = d[:, 0, :]
    d1 = d[:, 1, :]
    d2 = d[:, 2, :]
    # Explicit 3-term sum of squares: pure VPU adds, no cross-sublane reduce
    # over the 3 -> 8 padded sublane axis.
    ss = d0 * d0 + d1 * d1 + d2 * d2               # (1, TILE_N)

    mask0 = mask_ref[:, 0, :].astype(jnp.float32)  # (1, TILE_N)

    # Lanes past N (padding of a partial last tile) carry unspecified data;
    # mask them out of both the count and the loss, *before* the sqrt so
    # garbage can never produce NaN/Inf in the sums.
    col = jax.lax.broadcasted_iota(jnp.int32, (1, tile_n), 1)
    in_range = (col + k * tile_n) < n_points
    mask0 = jnp.where(in_range, mask0, 0.0)
    ss = jnp.where(in_range, ss, 0.0)

    lossvalue = jnp.sqrt(ss) * mask0               # (1, TILE_N)

    sumloss_ref[...] += jnp.sum(lossvalue, axis=1, keepdims=True)[None]
    nvalid_ref[...] += jnp.sum(mask0, axis=1, keepdims=True)[None]


def l2_warp(points_gt, points_pred, points_mask, *, tile_n=None):
    """Inputs: (B, N, 3) arrays matching the PyTorch module. Returns f32 scalar."""
    assert points_gt.shape[2] == 3, points_gt.shape
    assert points_pred.shape[2] == 3, points_pred.shape
    assert points_mask.shape[2] == 3, points_mask.shape
    # TODO(synk): the PyTorch module also runtime-asserts isfinite() on all
    # inputs / the loss; there is no cheap JAX/Pallas equivalent, so omitted.

    B, N, _ = points_gt.shape

    # Glue (XLA fuses it): fused diff in the kernel's lane-dense layout, and
    # only the single mask coordinate the loss actually uses.
    diff = jnp.transpose(points_pred - points_gt, (0, 2, 1))          # (B, 3, N)
    mask0 = points_mask[:, :, 0].astype(jnp.float32)[:, None, :]      # (B, 1, N)

    if tile_n is None:
        # Full-extent block when it fits (legal for any N); otherwise a
        # 128-multiple tile sized for v5e/v6e/v7x VMEM budgets.
        tile_n = N if N <= _MAX_TILE_N else _MAX_TILE_N
    n_k = pl.cdiv(N, tile_n)

    itemsize = jnp.dtype(diff.dtype).itemsize
    cost = pl.CostEstimate(
        flops=8 * B * N,
        transcendentals=B * N,
        bytes_accessed=B * 3 * N * itemsize + B * N * 4 + 2 * B * 4,
    )

    kernel = functools.partial(_l2_warp_kernel, n_points=N, tile_n=tile_n)

    sum_loss, num_valid = pl.pallas_call(
        kernel,
        out_shape=(
            jax.ShapeDtypeStruct((B, 1, 1), jnp.float32),
            jax.ShapeDtypeStruct((B, 1, 1), jnp.float32),
        ),
        grid_spec=pltpu.PrefetchScalarGridSpec(
            num_scalar_prefetch=0,
            grid=(B, n_k),
            in_specs=[
                pl.BlockSpec((1, 3, tile_n), lambda b, k: (b, 0, k)),
                pl.BlockSpec((1, 1, tile_n), lambda b, k: (b, 0, k)),
            ],
            out_specs=[
                pl.BlockSpec((1, 1, 1), lambda b, k: (b, 0, 0)),
                pl.BlockSpec((1, 1, 1), lambda b, k: (b, 0, 0)),
            ],
        ),
        compiler_params=pltpu.CompilerParams(
            dimension_semantics=("parallel", "arbitrary"),
        ),
        cost_estimate=cost,
    )(diff, mask0)

    sum_loss = sum_loss[:, 0, 0]       # (B,)
    num_valid = num_valid[:, 0, 0]     # (B,)

    valid = num_valid > 0.0
    per_batch = jnp.where(valid, sum_loss / jnp.where(valid, num_valid, 1.0), 0.0)
    n_valid_batches = jnp.sum(valid.astype(jnp.float32))
    # PyTorch returns torch.zeros(1) when no batch has a valid point; that is
    # numerically 0.0 — emitted here as a scalar (static shapes in JAX).
    return jnp.where(
        n_valid_batches > 0.0,
        jnp.sum(per_batch) / jnp.maximum(n_valid_batches, 1.0),
        0.0,
    )


def _l2_warp_ref(points_gt, points_pred, points_mask):
    """Pure-JAX reference mirroring the PyTorch forward (for self-check)."""
    mask0 = points_mask[:, :, 0].astype(jnp.float32)
    diff = points_pred - points_gt
    lossvalue = jnp.linalg.norm(diff, axis=2) * mask0
    num_valid = jnp.sum(mask0, axis=1)
    sum_loss = jnp.sum(lossvalue, axis=1)
    valid = num_valid > 0
    per_batch = jnp.where(valid, sum_loss / jnp.where(valid, num_valid, 1.0), 0.0)
    n_valid = jnp.sum(valid.astype(jnp.float32))
    return jnp.where(n_valid > 0, jnp.sum(per_batch) / jnp.maximum(n_valid, 1.0), 0.0)


if __name__ == "__main__":
    root = jax.random.PRNGKey(0)

    def make_inputs(key, B, N, zero_batch=None, all_zero=False):
        k1, k2, k3 = jax.random.split(key, 3)
        gt = jax.random.normal(k1, (B, N, 3), dtype=jnp.float32)
        pred = jax.random.normal(k2, (B, N, 3), dtype=jnp.float32)
        if all_zero:
            bits = jnp.zeros((B, N, 1), jnp.float32)
        else:
            bits = (jax.random.uniform(k3, (B, N, 1)) > 0.3).astype(jnp.float32)
            if zero_batch is not None:
                bits = bits.at[zero_batch].set(0.0)
        mask = jnp.broadcast_to(bits, (B, N, 3))
        return gt, pred, mask

    keys = jax.random.split(root, 5)
    cases = [
        # (inputs, kwargs)
        (make_inputs(keys[0], 2, 128), {}),                          # single tile
        (make_inputs(keys[1], 3, 384, zero_batch=1), {"tile_n": 128}),  # 3 tiles, one invalid batch
        (make_inputs(keys[2], 2, 200), {}),                          # N not multiple of 128 (full block)
        (make_inputs(keys[3], 2, 320), {"tile_n": 128}),             # partial last tile (OOB-lane masking)
        (make_inputs(keys[4], 2, 128, all_zero=True), {}),           # no valid batch -> 0.0
    ]

    for (gt, pred, mask), kwargs in cases:
        got = l2_warp(gt, pred, mask, **kwargs)
        jax.block_until_ready(got)
        want = _l2_warp_ref(gt, pred, mask)
        assert jnp.allclose(got, want, rtol=1e-5, atol=1e-6), (kwargs, got, want)

    print("KERNEL_OK")
</pallas_src>

<mosaic_0001>
module attributes {stable_mosaic.version = 11 : i64} {
  func.func @_l2_warp_kernel(%arg0: i32, %arg1: i32, %arg2: memref<1x3x128xf32, #tpu.memory_space<vmem>>, %arg3: memref<1x1x128xf32, #tpu.memory_space<vmem>>, %arg4: memref<1x1x1xf32, #tpu.memory_space<vmem>>, %arg5: memref<1x1x1xf32, #tpu.memory_space<vmem>>) attributes {dimension_semantics = [#tpu.dimension_semantics<parallel>, #tpu.dimension_semantics<arbitrary>], iteration_bounds = array<i64: 2, 1>, scalar_prefetch = 0 : i64, scratch_operands = 0 : i64, tpu.core_type = #tpu.core_type<tc>, window_params = [{transform_indices = @transform_0, window_bounds = array<i64: 1, 3, 128>}, {transform_indices = @transform_1, window_bounds = array<i64: 1, 1, 128>}, {transform_indices = @transform_2, window_bounds = array<i64: 1, 1, 1>}, {transform_indices = @transform_3, window_bounds = array<i64: 1, 1, 1>}]} {
    %c0_i32 = arith.constant 0 : i32
    %0 = arith.cmpi eq, %arg1, %c0_i32 : i32
    %1 = arith.extui %0 : i1 to i32
    %c0_i32_0 = arith.constant 0 : i32
    %2 = arith.cmpi ne, %1, %c0_i32_0 : i32
    scf.if %2 {
      %cst_22 = arith.constant 0.000000e+00 : f32
      %41 = vector.broadcast %cst_22 : f32 to vector<1x1x1xf32>
      %c0_23 = arith.constant 0 : index
      %c0_24 = arith.constant 0 : index
      %c0_25 = arith.constant 0 : index
      %42 = vector.load %arg4[%c0_23, %c0_24, %c0_25] : memref<1x1x1xf32, #tpu.memory_space<vmem>>, vector<1x1x1xf32>
      tpu.vector_store %arg4[%c0_23, %c0_24, %c0_25], %41 {strides = array<i32>} : memref<1x1x1xf32, #tpu.memory_space<vmem>>, vector<1x1x1xf32>,
      %cst_26 = arith.constant 0.000000e+00 : f32
      %43 = vector.broadcast %cst_26 : f32 to vector<1x1x1xf32>
      %c0_27 = arith.constant 0 : index
      %c0_28 = arith.constant 0 : index
      %c0_29 = arith.constant 0 : index
      %44 = vector.load %arg5[%c0_27, %c0_28, %c0_29] : memref<1x1x1xf32, #tpu.memory_space<vmem>>, vector<1x1x1xf32>
      tpu.vector_store %arg5[%c0_27, %c0_28, %c0_29], %43 {strides = array<i32>} : memref<1x1x1xf32, #tpu.memory_space<vmem>>, vector<1x1x1xf32>,
    } else {
    }
    %c0 = arith.constant 0 : index
    %c0_1 = arith.constant 0 : index
    %c0_2 = arith.constant 0 : index
    %3 = vector.load %arg2[%c0, %c0_1, %c0_2] : memref<1x3x128xf32, #tpu.memory_space<vmem>>, vector<1x3x128xf32>
    %4 = vector.extract_strided_slice %3 {offsets = [0, 0, 0], sizes = [1, 1, 128], strides = [1, 1, 1]} : vector<1x3x128xf32> to vector<1x1x128xf32>
    %5 = vector.shape_cast %4 : vector<1x1x128xf32> to vector<1x128xf32>
    %6 = vector.extract_strided_slice %3 {offsets = [0, 1, 0], sizes = [1, 1, 128], strides = [1, 1, 1]} : vector<1x3x128xf32> to vector<1x1x128xf32>
    %7 = vector.shape_cast %6 : vector<1x1x128xf32> to vector<1x128xf32>
    %8 = vector.extract_strided_slice %3 {offsets = [0, 2, 0], sizes = [1, 1, 128], strides = [1, 1, 1]} : vector<1x3x128xf32> to vector<1x1x128xf32>
    %9 = vector.shape_cast %8 : vector<1x1x128xf32> to vector<1x128xf32>
    %10 = arith.mulf %5, %5 : vector<1x128xf32>
    %11 = arith.mulf %7, %7 : vector<1x128xf32>
    %12 = arith.addf %10, %11 : vector<1x128xf32>
    %13 = arith.mulf %9, %9 : vector<1x128xf32>
    %14 = arith.addf %12, %13 : vector<1x128xf32>
    %c0_3 = arith.constant 0 : index
    %c0_4 = arith.constant 0 : index
    %c0_5 = arith.constant 0 : index
    %15 = vector.load %arg3[%c0_3, %c0_4, %c0_5] : memref<1x1x128xf32, #tpu.memory_space<vmem>>, vector<1x1x128xf32>
    %16 = vector.shape_cast %15 : vector<1x1x128xf32> to vector<1x128xf32>
    %17 = tpu.iota {dimensions = array<i32: 1>} : vector<1x128xi32>
    %c128_i32 = arith.constant 128 : i32
    %18 = arith.muli %arg1, %c128_i32 : i32
    %19 = vector.broadcast %18 : i32 to vector<1x128xi32>
    %20 = arith.addi %17, %19 : vector<1x128xi32>
    %c128_i32_6 = arith.constant 128 : i32
    %21 = vector.broadcast %c128_i32_6 : i32 to vector<1x128xi32>
    %22 = arith.cmpi slt, %20, %21 : vector<1x128xi32>
    %cst = arith.constant 0.000000e+00 : f32
    %23 = vector.broadcast %cst : f32 to vector<1x128xf32>
    %24 = arith.select %22, %16, %23 : vector<1x128xi1>, vector<1x128xf32>
    %cst_7 = arith.constant 0.000000e+00 : f32
    %25 = vector.broadcast %cst_7 : f32 to vector<1x128xf32>
    %26 = arith.select %22, %14, %25 : vector<1x128xi1>, vector<1x128xf32>
    %27 = math.sqrt %26 : vector<1x128xf32>
    %28 = arith.mulf %27, %24 : vector<1x128xf32>
    %c0_8 = arith.constant 0 : index
    %c0_9 = arith.constant 0 : index
    %c0_10 = arith.constant 0 : index
    %29 = vector.load %arg4[%c0_8, %c0_9, %c0_10] : memref<1x1x1xf32, #tpu.memory_space<vmem>>, vector<1x1x1xf32>
    %cst_11 = arith.constant dense<0.000000e+00> : vector<1xf32>
    %30 = vector.multi_reduction <add>, %28, %cst_11 [1] : vector<1x128xf32> to vector<1xf32>
    %31 = vector.shape_cast %30 : vector<1xf32> to vector<1x1xf32>
    %32 = vector.shape_cast %31 : vector<1x1xf32> to vector<1x1x1xf32>
    %33 = arith.addf %29, %32 : vector<1x1x1xf32>
    %c0_12 = arith.constant 0 : index
    %c0_13 = arith.constant 0 : index
    %c0_14 = arith.constant 0 : index
    %34 = vector.load %arg4[%c0_12, %c0_13, %c0_14] : memref<1x1x1xf32, #tpu.memory_space<vmem>>, vector<1x1x1xf32>
    tpu.vector_store %arg4[%c0_12, %c0_13, %c0_14], %33 {strides = array<i32>} : memref<1x1x1xf32, #tpu.memory_space<vmem>>, vector<1x1x1xf32>,
    %c0_15 = arith.constant 0 : index
    %c0_16 = arith.constant 0 : index
    %c0_17 = arith.constant 0 : index
    %35 = vector.load %arg5[%c0_15, %c0_16, %c0_17] : memref<1x1x1xf32, #tpu.memory_space<vmem>>, vector<1x1x1xf32>
    %cst_18 = arith.constant dense<0.000000e+00> : vector<1xf32>
    %36 = vector.multi_reduction <add>, %24, %cst_18 [1] : vector<1x128xf32> to vector<1xf32>
    %37 = vector.shape_cast %36 : vector<1xf32> to vector<1x1xf32>
    %38 = vector.shape_cast %37 : vector<1x1xf32> to vector<1x1x1xf32>
    %39 = arith.addf %35, %38 : vector<1x1x1xf32>
    %c0_19 = arith.constant 0 : index
    %c0_20 = arith.constant 0 : index
    %c0_21 = arith.constant 0 : index
    %40 = vector.load %arg5[%c0_19, %c0_20, %c0_21] : memref<1x1x1xf32, #tpu.memory_space<vmem>>, vector<1x1x1xf32>
    tpu.vector_store %arg5[%c0_19, %c0_20, %c0_21], %39 {strides = array<i32>} : memref<1x1x1xf32, #tpu.memory_space<vmem>>, vector<1x1x1xf32>,
    return
  }
  func.func @transform_0(%arg0: i32, %arg1: i32) -> (i32, i32, i32) {
    %c0_i32 = arith.constant 0 : i32
    %c0_i32_0 = arith.constant 0 : i32
    return %arg0, %c0_i32, %arg1 : i32, i32, i32
  }
  func.func @transform_1(%arg0: i32, %arg1: i32) -> (i32, i32, i32) {
    %c0_i32 = arith.constant 0 : i32
    %c0_i32_0 = arith.constant 0 : i32
    return %arg0, %c0_i32, %arg1 : i32, i32, i32
  }
  func.func @transform_2(%arg0: i32, %arg1: i32) -> (i32, i32, i32) {
    %c0_i32 = arith.constant 0 : i32
    %c0_i32_0 = arith.constant 0 : i32
    %c0_i32_1 = arith.constant 0 : i32
    return %arg0, %c0_i32, %c0_i32_0 : i32, i32, i32
  }
  func.func @transform_3(%arg0: i32, %arg1: i32) -> (i32, i32, i32) {
    %c0_i32 = arith.constant 0 : i32
    %c0_i32_0 = arith.constant 0 : i32
    %c0_i32_1 = arith.constant 0 : i32
    return %arg0, %c0_i32, %c0_i32_0 : i32, i32, i32
  }
}

</mosaic_0001>

<llo_original>
// kernel: tpu_custom_call.1
$region0: #{tpu_custom_call.1}
  #allocation0 [shape = 'u32[]', space=smem, size = 0x4, offset = 0x4, fixed_abs, tag = 'smem constant byte address 0x4 - core index']
  #allocation1 [shape = 'u32[144,128]{1,0:T(1,128)}', space=vmem, size = 0x12000, scoped, tag = 'internal scratch']
  %s0 = inlined_call_operand.vmem [shape: f32[2,3,128], index: 0, kind: input, shape index: {}]
  %s1 = inlined_call_operand.vmem [shape: f32[2,1,128], index: 1, kind: input, shape index: {}]
  %s2 = inlined_call_operand.vmem [shape: f32[2,1,1], index: 2, kind: output, shape index: {0}]
  %s3 = inlined_call_operand.vmem [shape: f32[2,1,1], index: 3, kind: output, shape index: {1}]
  %4 = xla_tuple %s2, %s3
  %s5 = sld [smem:[#allocation0]]
  $region53: #{tpu_custom_call.1} parent=0
    _
  %s7 = ssub.s32 1, %s5
  %s8 = scalar_select 0, %s7, %s5
  loop: start=0, step=1, limit=4
  $region2: #{tpu_custom_call.1} parent=0 // loop_pre_header
    _
  $region3: #{tpu_custom_call.1} parent=0 // loop_header
    %s10 = sphi 0, %s14
    %p11 = scmp.ge.s32.totalorder %s10, 4
    %s17 = sphi 0, %s29
    %s18 = sphi 0, %s25
    %s19 = sphi 0, %s17
    %s20 = sphi 0, %s18
    %s21 = sphi 0, %s19
    %s22 = sphi 0, %s20
    %s34 = sphi 0, %s36
    %s37 = sphi 0, %s34
    %s38 = sphi 0, %s37
    %s54 = sphi 0, %s38
    %s62 = sphi 0, %s64
    %s65 = sphi 0, %s62
    %s66 = sphi 0, %s65
    %s82 = sphi 0, %s66
    %s88 = sphi 0, %s90
    %s91 = sphi 0, %s88
    %s92 = sphi 0, %s91
    %s108 = sphi 0, %s92
    %s114 = sphi 0, %s116
    %s117 = sphi 0, %s114
    %s118 = sphi 0, %s117
    %s134 = sphi 0, %s118
  $region4: #{tpu_custom_call.1} parent=0 // loop_header_branch
    %13 = sbr.rel (%p11) target = $region8
  $region5: #{tpu_custom_call.1} parent=0 // loop_body
    %s15 = ssub.s32 %s10, 1
    %s16 = ssub.s32 %s10, 2
    %s23 = sadd.s32 1, %s18
    %p24 = scmp.ge.s32.totalorder %s23, 1
    %s25 = scalar_select %p24, 0, %s23
    %s26 = sadd.s32 1, %s17
    %s27 = scalar_select %p24, %s26, %s17
    %p28 = scmp.ge.s32.totalorder %s27, 2
    %s29 = scalar_select %p28, 0, %s27
    %s30 = ssub.s32 %s17, %s29
    %s31 = ssub.s32 %s18, %s25
    %s32 = sor.u32 %s30, %s31
    %p33 = scmp.eq.s32.totalorder %s32, 0
    %s35 = sadd.s32 %s34, 1
    %s36 = scalar_select %p33, %s34, %s35
    %p39 = pneg %p33
    %p40 = scmp.eq.s32.totalorder %s10, 1
    %p41 = por %p39, %p40
    %p42 = scmp.ne.s32.totalorder %s34, %s37
    %p43 = scmp.eq.s32.totalorder %s10, 0
    %p44 = por %p42, %p43
    %p45 = scmp.ne.s32.totalorder %s34, %s37
    %p46 = scmp.eq.s32.totalorder %s15, 1
    %p47 = por %p45, %p46
    %p48 = scmp.ne.s32.totalorder %s37, %s38
    %p49 = scmp.eq.s32.totalorder %s15, 0
    %p50 = por %p48, %p49
    %p51 = scmp.ne.s32.totalorder %s37, %s38
    %p52 = scmp.eq.s32.totalorder %s16, 1
    %p53 = por %p51, %p52
    %p55 = scmp.ne.s32.totalorder %s38, %s54
    %p56 = scmp.eq.s32.totalorder %s16, 0
    %p57 = por %p55, %p56
    %s58 = ssub.s32 %s17, %s29
    %s59 = ssub.s32 %s18, %s25
    %s60 = sor.u32 %s58, %s59
    %p61 = scmp.eq.s32.totalorder %s60, 0
    %s63 = sadd.s32 %s62, 1
    %s64 = scalar_select %p61, %s62, %s63
    %p67 = pneg %p61
    %p68 = scmp.eq.s32.totalorder %s10, 1
    %p69 = por %p67, %p68
    %p70 = scmp.ne.s32.totalorder %s62, %s65
    %p71 = scmp.eq.s32.totalorder %s10, 0
    %p72 = por %p70, %p71
    %p73 = scmp.ne.s32.totalorder %s62, %s65
    %p74 = scmp.eq.s32.totalorder %s15, 1
    %p75 = por %p73, %p74
    %p76 = scmp.ne.s32.totalorder %s65, %s66
    %p77 = scmp.eq.s32.totalorder %s15, 0
    %p78 = por %p76, %p77
    %p79 = scmp.ne.s32.totalorder %s65, %s66
    %p80 = scmp.eq.s32.totalorder %s16, 1
    %p81 = por %p79, %p80
    %p83 = scmp.ne.s32.totalorder %s66, %s82
    %p84 = scmp.eq.s32.totalorder %s16, 0
    %p85 = por %p83, %p84
    %s86 = ssub.s32 %s17, %s29
    %p87 = scmp.eq.s32.totalorder %s86, 0
    %s89 = sadd.s32 %s88, 1
    %s90 = scalar_select %p87, %s88, %s89
    %p93 = pneg %p87
    %p94 = scmp.eq.s32.totalorder %s10, 1
    %p95 = por %p93, %p94
    %p96 = scmp.ne.s32.totalorder %s88, %s91
    %p97 = scmp.eq.s32.totalorder %s10, 0
    %p98 = por %p96, %p97
    %p99 = scmp.ne.s32.totalorder %s88, %s91
    %p100 = scmp.eq.s32.totalorder %s15, 1
    %p101 = por %p99, %p100
    %p102 = scmp.ne.s32.totalorder %s91, %s92
    %p103 = scmp.eq.s32.totalorder %s15, 0
    %p104 = por %p102, %p103
    %p105 = scmp.ne.s32.totalorder %s91, %s92
    %p106 = scmp.eq.s32.totalorder %s16, 1
    %p107 = por %p105, %p106
    %p109 = scmp.ne.s32.totalorder %s92, %s108
    %p110 = scmp.eq.s32.totalorder %s16, 0
    %p111 = por %p109, %p110
    %s112 = ssub.s32 %s17, %s29
    %p113 = scmp.eq.s32.totalorder %s112, 0
    %s115 = sadd.s32 %s114, 1
    %s116 = scalar_select %p113, %s114, %s115
    %p119 = pneg %p113
    %p120 = scmp.eq.s32.totalorder %s10, 1
    %p121 = por %p119, %p120
    %p122 = scmp.ne.s32.totalorder %s114, %s117
    %p123 = scmp.eq.s32.totalorder %s10, 0
    %p124 = por %p122, %p123
    %p125 = scmp.ne.s32.totalorder %s114, %s117
    %p126 = scmp.eq.s32.totalorder %s15, 1
    %p127 = por %p125, %p126
    %p128 = scmp.ne.s32.totalorder %s117, %s118
    %p129 = scmp.eq.s32.totalorder %s15, 0
    %p130 = por %p128, %p129
    %p131 = scmp.ne.s32.totalorder %s117, %s118
    %p132 = scmp.eq.s32.totalorder %s16, 1
    %p133 = por %p131, %p132
    %p135 = scmp.ne.s32.totalorder %s118, %s134
    %p136 = scmp.eq.s32.totalorder %s16, 0
    %p137 = por %p135, %p136
    %p138 = scmp.le.s32.totalorder 1, %s10
    %p139 = scmp.lt.s32.totalorder %s10, 3
    %p140 = pnand %p138, %p139
    %p141 = pneg %p140
    // Predicated region
    $region9: #{tpu_custom_call.1} parent=5 // pred_check
      _
    $region10: #{tpu_custom_call.1} parent=5 // pred_check_branch
      %143 = sbr.rel (%p140) target = $region12
    $region11: #{tpu_custom_call.1} parent=5 // pred_region
      %s144 = ssub.s32 %s10, 1
    $region12: #{tpu_custom_call.1} parent=5 // pred_fallthru
      _
    %p145 = scmp.lt.s32.totalorder %s10, 2
    // Predicated region
    $region13: #{tpu_custom_call.1} parent=5 // pred_check
      %p146 = pneg %p145
    $region14: #{tpu_custom_call.1} parent=5 // pred_check_branch
      %148 = sbr.rel (%p146) target = $region16
    $region15: #{tpu_custom_call.1} parent=5 // pred_region
      // Predicated region
      $region17: #{tpu_custom_call.1} parent=15 // pred_check
        %p149 = pneg %p44
      $region18: #{tpu_custom_call.1} parent=15 // pred_check_branch
        %151 = sbr.rel (%p149) target = $region20
      $region19: #{tpu_custom_call.1} parent=15 // pred_region
        %p152 = scmp.lt.s32.totalorder %s17, 1
        %s153 = scalar_select %p152, %s17, 1
        %p154 = scmp.lt.s32.totalorder %s18, 0
        %s155 = scalar_select %p154, %s18, 0
        %s156 = sadd.s32 %s155, %s153
        %s157 = smul.addr %s156, 4
        %s158 = scalar_lea.vmem %s0, %s157
      $region20: #{tpu_custom_call.1} parent=15 // pred_fallthru
        _
      // Predicated region
      $region21: #{tpu_custom_call.1} parent=15 // pred_check
        %p159 = pneg %p72
      $region22: #{tpu_custom_call.1} parent=15 // pred_check_branch
        %161 = sbr.rel (%p159) target = $region24
      $region23: #{tpu_custom_call.1} parent=15 // pred_region
        %p162 = scmp.lt.s32.totalorder %s17, 1
        %s163 = scalar_select %p162, %s17, 1
        %p164 = scmp.lt.s32.totalorder %s18, 0
        %s165 = scalar_select %p164, %s18, 0
        %s166 = sadd.s32 %s165, %s163
        %s167 = scalar_lea.vmem %s1, %s166
      $region24: #{tpu_custom_call.1} parent=15 // pred_fallthru
        _
    $region16: #{tpu_custom_call.1} parent=5 // pred_fallthru
      _
    %p168 = scmp.le.s32.totalorder 1, %s10
    %p169 = scmp.lt.s32.totalorder %s10, 3
    %p170 = pnand %p168, %p169
    %p171 = pneg %p170
    // Predicated region
    $region25: #{tpu_custom_call.1} parent=5 // pred_check
      _
    $region26: #{tpu_custom_call.1} parent=5 // pred_check_branch
      %173 = sbr.rel (%p170) target = $region28
    $region27: #{tpu_custom_call.1} parent=5 // pred_region
      %s174 = ssub.s32 %s10, 1
      %p175 = scmp.lt.s32.totalorder %s19, 1
      %s176 = scalar_select %p175, %s19, 1
      %p177 = scmp.lt.s32.totalorder %s20, 0
      %s178 = scalar_select %p177, %s20, 0
      %s179 = sadd.s32 %s178, %s176
      %s180 = smul.addr %s179, 4
      %s181 = scalar_lea.vmem %s0, %s180
      %p182 = pneg %p50
      %p183 = pneg %p47
      %p184 = scmp.lt.s32.totalorder %s19, 1
      %s185 = scalar_select %p184, %s19, 1
      %p186 = scmp.lt.s32.totalorder %s20, 0
      %s187 = scalar_select %p186, %s20, 0
      %s188 = sadd.s32 %s187, %s185
      %s189 = scalar_lea.vmem %s1, %s188
      %p190 = pneg %p78
      %p191 = pneg %p75
      %p192 = pneg %p104
      %p193 = pneg %p101
      %p194 = scmp.lt.s32.totalorder %s19, 1
      %s195 = scalar_select %p194, %s19, 1
      %s196 = scalar_lea.vmem %s2, %s195
      %p197 = pneg %p130
      %p198 = pneg %p127
      %p199 = scmp.lt.s32.totalorder %s19, 1
      %s200 = scalar_select %p199, %s19, 1
      %s201 = scalar_lea.vmem %s3, %s200
      %p202 = scmp.lt.s32.totalorder %s19, 1
      %s203 = scalar_select %p202, %s19, 1
      %p204 = scmp.lt.s32.totalorder %s20, 0
      %s205 = scalar_select %p204, %s20, 0
      %s206 = sadd.s32 %s205, %s203
      %s207 = smul.addr %s206, 4
      %s208 = scalar_lea.vmem %s0, %s207
      %p209 = scmp.lt.s32.totalorder %s19, 1
      %s210 = scalar_select %p209, %s19, 1
      %p211 = scmp.lt.s32.totalorder %s20, 0
      %s212 = scalar_select %p211, %s20, 0
      %s213 = sadd.s32 %s212, %s210
      %s214 = scalar_lea.vmem %s1, %s213
      %p215 = scmp.lt.s32.totalorder %s19, 1
      %s216 = scalar_select %p215, %s19, 1
      %s217 = scalar_lea.vmem %s2, %s216
      %p218 = scmp.lt.s32.totalorder %s19, 1
      %s219 = scalar_select %p218, %s19, 1
      %s220 = scalar_lea.vmem %s3, %s219
      %p221 = scmp.eq.s32.totalorder %s20, 0
      // Predicated region
      $region29: #{tpu_custom_call.1} parent=27 // pred_check
        %p222 = pneg %p221
      $region30: #{tpu_custom_call.1} parent=27 // pred_check_branch
        %224 = sbr.rel (%p222) target = $region32
      $region31: #{tpu_custom_call.1} parent=27 // pred_region
        %vm225 = vcmask 0
        %226 = vst.msk [vmem:[%s217] sm:$0x1] %vm225, 0.0
        %227 = vst.msk [vmem:[%s220] sm:$0x1] %vm225, 0.0
      $region32: #{tpu_custom_call.1} parent=27 // pred_fallthru
        _
      %v228 = vld [vmem:[%s208] sm:$0x7]
      %v229 = vmul.f32 %v228, %v228
      %v231 = vrot.slane %v229, 1
      %v233 = vadd.f32 %v229, %v231
      %v234 = vrot.slane %v229, 2
      %v236 = vadd.f32 %v233, %v234
      %v237 = vld [vmem:[%s214] sm:$0x1]
      %v238 = vlaneseq
      %v239 = vand.u32 %v238, 127
      %s240 = smul.u32 %s20, 128
      %v241 = vstv %s240
      %v242 = vadd.s32 %v239, %v241
      %vm243 = vcmp.lt.s32.totalorder %v242, 128
      %v244 = vsel %vm243, %v237, 0.0
      %v245 = vsel %vm243, %v236, 0.0
      %v246 = vrsqrt.pop %v245
      %v247 = vmul.f32 %v245, %v246
      %vm248 = vcmp.eq.f32.partialorder %v245, inf
      %v249 = vsel %vm248, %v245, %v247
      %vm250 = vcmp.eq.f32.partialorder %v245, 0.0
      %v251 = vand.u32 %v245, 2147483648
      %v252 = vsel %vm250, %v251, %v249
      %v253 = vmul.f32 %v252, %v244
      %v254 = vld [vmem:[%s217] sm:$0x1]
      %vm255 = vcmask 1040384
      %v256 = vsel %vm255, %v253, 0.0
      %257 = vadd.xlane.f32.xlu0 %v256
      %v258 = vpop.xlane.xlu0 %257
      %v259 = vadd.f32 %v254, %v258
      %vm260 = vcmask 0
      %261 = vst.msk [vmem:[%s217] sm:$0x1] %vm260, %v259
      %v262 = vld [vmem:[%s220] sm:$0x1]
      %v263 = vsel %vm255, %v244, 0.0
      %264 = vadd.xlane.f32.xlu0 %v263
      %v265 = vpop.xlane.xlu0 %264
      %v266 = vadd.f32 %v262, %v265
      %267 = vst.msk [vmem:[%s220] sm:$0x1] %vm260, %v266
      %p268 = scmp.lt.s32.totalorder %s19, 1
      %s269 = scalar_select %p268, %s19, 1
      %s270 = scalar_lea.vmem %s2, %s269
      %p271 = scmp.lt.s32.totalorder %s19, 1
      %s272 = scalar_select %p271, %s19, 1
      %s273 = scalar_lea.vmem %s3, %s272
      // Predicated region
      $region33: #{tpu_custom_call.1} parent=27 // pred_check
        %p274 = pneg %p101
      $region34: #{tpu_custom_call.1} parent=27 // pred_check_branch
        %276 = sbr.rel (%p274) target = $region36
      $region35: #{tpu_custom_call.1} parent=27 // pred_region
        _
      $region36: #{tpu_custom_call.1} parent=27 // pred_fallthru
        _
      // Predicated region
      $region37: #{tpu_custom_call.1} parent=27 // pred_check
        %p277 = pneg %p127
      $region38: #{tpu_custom_call.1} parent=27 // pred_check_branch
        %279 = sbr.rel (%p277) target = $region40
      $region39: #{tpu_custom_call.1} parent=27 // pred_region
        _
      $region40: #{tpu_custom_call.1} parent=27 // pred_fallthru
        _
    $region28: #{tpu_custom_call.1} parent=5 // pred_fallthru
      _
    %p280 = scmp.le.s32.totalorder 2, %s10
    // Predicated region
    $region41: #{tpu_custom_call.1} parent=5 // pred_check
      %p281 = pneg %p280
    $region42: #{tpu_custom_call.1} parent=5 // pred_check_branch
      %283 = sbr.rel (%p281) target = $region44
    $region43: #{tpu_custom_call.1} parent=5 // pred_region
      %s284 = ssub.s32 %s10, 2
      // Predicated region
      $region45: #{tpu_custom_call.1} parent=43 // pred_check
        %p285 = pneg %p107
      $region46: #{tpu_custom_call.1} parent=43 // pred_check_branch
        %287 = sbr.rel (%p285) target = $region48
      $region47: #{tpu_custom_call.1} parent=43 // pred_region
        %p288 = scmp.lt.s32.totalorder %s21, 1
        %s289 = scalar_select %p288, %s21, 1
        %s290 = scalar_lea.vmem %s2, %s289
      $region48: #{tpu_custom_call.1} parent=43 // pred_fallthru
        _
      // Predicated region
      $region49: #{tpu_custom_call.1} parent=43 // pred_check
        %p291 = pneg %p133
      $region50: #{tpu_custom_call.1} parent=43 // pred_check_branch
        %293 = sbr.rel (%p291) target = $region52
      $region51: #{tpu_custom_call.1} parent=43 // pred_region
        %p294 = scmp.lt.s32.totalorder %s21, 1
        %s295 = scalar_select %p294, %s21, 1
        %s296 = scalar_lea.vmem %s3, %s295
      $region52: #{tpu_custom_call.1} parent=43 // pred_fallthru
        _
    $region44: #{tpu_custom_call.1} parent=5 // pred_fallthru
      _
  $region6: #{tpu_custom_call.1} parent=0 // loop_footer
    %s14 = sadd.s32 1, %s10
  $region7: #{tpu_custom_call.1} parent=0 // loop_footer_branch
    %9 = sbr.rel target = $region3
  $region8: #{tpu_custom_call.1} parent=0 // loop_exit
    _

</llo_original>
